<compile_context>
chip_gen: v7x
topology: tpu7x:2x2x1
jax: 0.10.0
libtpu: 0.0.40
codegen_flags: <defaults>
</compile_context>

<pallas_src>
import jax
import jax.numpy as jnp
from jax.experimental import pallas as pl
from jax.experimental.pallas import tpu as pltpu


def linear_kernel(x_ref, wp_ref, o_ref):
    # x_ref : (tm, in_f) activation tile
    # wp_ref: (in_f + 1, out_f) packed params = [W.T ; bias_row], VMEM-resident
    in_f = x_ref.shape[1]
    w = wp_ref[0:in_f, :]            # (in_f, out_f) pre-transposed weight
    b = wp_ref[in_f:in_f + 1, :]     # (1, out_f) bias row
    acc = jnp.dot(x_ref[...], w, preferred_element_type=jnp.float32)
    o_ref[...] = (acc + b).astype(o_ref.dtype)


def pack_linear_params(weight, bias):
    """One-time, init-time packing.

    weight: (out, in) in PyTorch layout; bias: (out,).
    Returns (in + 1, out): rows 0..in-1 are W.T, last row is the bias.
    """
    return jnp.concatenate([weight.T, bias.reshape(1, -1)], axis=0)


def linear_pallas(x, packed):
    """x: (B, in_f), packed: (in_f + 1, out_f) from pack_linear_params."""
    B, in_f = x.shape
    out_f = packed.shape[1]

    # Batch tiling: whole batch if tiny, otherwise 8-sublane-aligned tiles that
    # divide B. Parameters stay VMEM-resident across all batch tiles.
    if B > 8 and B % 8 == 0:
        tm = min(B, 512)
        while B % tm != 0:
            tm //= 2
    else:
        tm = B
    grid = (B // tm,)

    cost = pl.CostEstimate(
        flops=2 * B * in_f * out_f,
        transcendentals=0,
        bytes_accessed=4 * (B * in_f + (in_f + 1) * out_f + B * out_f),
    )

    return pl.pallas_call(
        linear_kernel,
        out_shape=jax.ShapeDtypeStruct((B, out_f), x.dtype),
        grid=grid,
        in_specs=[
            pl.BlockSpec((tm, in_f), lambda i: (i, 0)),
            # same block for every grid point -> loaded once, stays resident
            pl.BlockSpec((in_f + 1, out_f), lambda i: (0, 0)),
        ],
        out_specs=pl.BlockSpec((tm, out_f), lambda i: (i, 0)),
        compiler_params=pltpu.CompilerParams(
            dimension_semantics=("parallel",),
        ),
        cost_estimate=cost,
    )(x, packed)


@jax.jit
def model_forward(x1, packed):
    v1 = linear_pallas(x1, packed)
    # torch.cat(v1, dim=1) with a single result tensor -> identity.
    # TODO(synk): torch.cat over a bare Tensor is ill-formed in PyTorch; we
    # keep the well-defined interpretation (no-op concat of the linear output).
    return v1


if __name__ == "__main__":
    key = jax.random.PRNGKey(0)
    kx, kw, kb = jax.random.split(key, 3)

    # Module shapes: Linear(8, 8, bias=True); input x1 of shape (1, 8)
    x1 = jax.random.normal(kx, (1, 8), dtype=jnp.float32)
    weight = jax.random.normal(kw, (8, 8), dtype=jnp.float32) * 0.1  # (out, in)
    bias = jax.random.normal(kb, (8,), dtype=jnp.float32) * 0.1

    # One-time parameter packing (init-time, outside the jitted forward).
    packed = pack_linear_params(weight, bias)

    out = model_forward(x1, packed)
    out = jax.block_until_ready(out)

    # Sanity check against plain-JAX reference of the PyTorch addmm.
    ref = x1 @ weight.T + bias
    assert out.shape == (1, 8)
    assert jnp.allclose(out, ref, atol=1e-5), "mismatch vs reference"

    print("KERNEL_OK")
</pallas_src>

<mosaic_0001>
module attributes {stable_mosaic.version = 11 : i64} {
  func.func @linear_kernel(%arg0: i32, %arg1: memref<1x8xf32, #tpu.memory_space<vmem>>, %arg2: memref<9x8xf32, #tpu.memory_space<vmem>>, %arg3: memref<1x8xf32, #tpu.memory_space<vmem>>) attributes {dimension_semantics = [#tpu.dimension_semantics<parallel>], iteration_bounds = array<i64: 1>, scalar_prefetch = 0 : i64, scratch_operands = 0 : i64, tpu.core_type = #tpu.core_type<tc>, window_params = [{transform_indices = @transform_0, window_bounds = array<i64: 1, 8>}, {pipeline_mode = #tpu.pipeline_mode<synchronous>, transform_indices = @transform_1, window_bounds = array<i64: 9, 8>}, {transform_indices = @transform_2, window_bounds = array<i64: 1, 8>}]} {
    %c0 = arith.constant 0 : index
    %c0_0 = arith.constant 0 : index
    %0 = vector.load %arg2[%c0, %c0_0] : memref<9x8xf32, #tpu.memory_space<vmem>>, vector<8x8xf32>
    %c8 = arith.constant 8 : index
    %c0_1 = arith.constant 0 : index
    %1 = vector.load %arg2[%c8, %c0_1] : memref<9x8xf32, #tpu.memory_space<vmem>>, vector<1x8xf32>
    %c0_2 = arith.constant 0 : index
    %c0_3 = arith.constant 0 : index
    %2 = vector.load %arg1[%c0_2, %c0_3] : memref<1x8xf32, #tpu.memory_space<vmem>>, vector<1x8xf32>
    %cst = arith.constant dense<0.000000e+00> : vector<1x8xf32>
    %3 = tpu.matmul %2, %0, %cst {dimension_numbers = #tpu.dot_dimension_numbers<[1], [0], [0], [1], [0, 0, 1, 1], [], []>} : vector<1x8xf32>, vector<8x8xf32>, vector<1x8xf32> -> vector<1x8xf32>
    %4 = arith.addf %3, %1 : vector<1x8xf32>
    %c0_4 = arith.constant 0 : index
    %c0_5 = arith.constant 0 : index
    %5 = vector.load %arg3[%c0_4, %c0_5] : memref<1x8xf32, #tpu.memory_space<vmem>>, vector<1x8xf32>
    tpu.vector_store %arg3[%c0_4, %c0_5], %4 {strides = array<i32>} : memref<1x8xf32, #tpu.memory_space<vmem>>, vector<1x8xf32>,
    return
  }
  func.func @transform_0(%arg0: i32) -> (i32, i32) {
    %c0_i32 = arith.constant 0 : i32
    %c0_i32_0 = arith.constant 0 : i32
    return %arg0, %c0_i32 : i32, i32
  }
  func.func @transform_1(%arg0: i32) -> (i32, i32) {
    %c0_i32 = arith.constant 0 : i32
    %c0_i32_0 = arith.constant 0 : i32
    %c0_i32_1 = arith.constant 0 : i32
    return %c0_i32, %c0_i32_0 : i32, i32
  }
  func.func @transform_2(%arg0: i32) -> (i32, i32) {
    %c0_i32 = arith.constant 0 : i32
    %c0_i32_0 = arith.constant 0 : i32
    return %arg0, %c0_i32 : i32, i32
  }
}

</mosaic_0001>

<llo_original>
// kernel: model_forward.1
$region0: #{model_forward.1}
  #allocation0 [shape = 'u32[]', space=smem, size = 0x4, offset = 0x4, fixed_abs, tag = 'smem constant byte address 0x4 - core index']
  #allocation1 [shape = 'u32[144,128]{1,0:T(1,128)}', space=vmem, size = 0x12000, scoped, tag = 'internal scratch']
  %s0 = inlined_call_operand.vmem [shape: f32[1,8], index: 0, kind: input, shape index: {}]
  %s1 = inlined_call_operand.vmem [shape: f32[9,8], index: 1, kind: input, shape index: {}]
  %s2 = inlined_call_operand.hbm [shape: f32[1,8], index: 2, kind: output, shape index: {}]
  %s3 = sld [smem:[#allocation0]]
  $region18: #{model_forward.1} parent=0
    _
  %s5 = ssub.s32 1, %s3
  %s6 = scalar_select 0, %s5, %s3
  $region1: #{model_forward.1} parent=0
    #allocation2 [shape = 'u8[512]{0}', space=vmem, size = 0x400, scoped, tag = 'output window, operand 0, single buffered']
    #allocation3 [shape = 's32[1]{0}', space=sflag, size = 0x4, scoped, tag = 'scoped memory for model_forward.1']
    %7 = vsyncpa [#allocation3], 0
    // Predicated region
    $region2: #{model_forward.1} parent=1 // pred_check
      _
    $region3: #{model_forward.1} parent=1 // pred_check_branch
      %9 = sbr.rel (0) target = $region5
    $region4: #{model_forward.1} parent=1 // pred_region
      _
    $region5: #{model_forward.1} parent=1 // pred_fallthru
      _
    // Predicated region
    $region6: #{model_forward.1} parent=1 // pred_check
      _
    $region7: #{model_forward.1} parent=1 // pred_check_branch
      %11 = sbr.rel (0) target = $region9
    $region8: #{model_forward.1} parent=1 // pred_region
      _
    $region9: #{model_forward.1} parent=1 // pred_fallthru
      _
    %v12 = vld [vmem:[%s1] sm:$0xff]
    %v13 = vld [vmem:[%s1 + $0x8] sm:$0x1]
    %v14 = vld [vmem:[%s0] sm:$0x1]
    %vm15 = vcmask 64512
    %v17 = vsel %vm15, %v14, 0
    %19 = vmatprep.subr.mxu0 0.0
    %20 = vmatpush1.msra.mxu0 %v12
    %21 = vmatprep.subr.mxu0 0.0
    %22 = vmatpush1.msra.mxu0 0.0
    %23 = vmatprep.subr.mxu0 0.0
    %24 = vmatpush1.msra.mxu0 0.0
    %25 = vmatprep.subr.mxu0 0.0
    %26 = vmatpush1.msra.mxu0 0.0
    %27 = vmatprep.subr.mxu0 0.0
    %28 = vmatpush1.msra.mxu0 0.0
    %29 = vmatprep.subr.mxu0 0.0
    %30 = vmatpush1.msra.mxu0 0.0
    %31 = vmatprep.subr.mxu0 0.0
    %32 = vmatpush1.msra.mxu0 0.0
    %33 = vmatprep.subr.mxu0 0.0
    %34 = vmatpush1.msra.mxu0 0.0
    %35 = vmatprep.subr.mxu0 0.0
    %36 = vmatpush1.msra.mxu0 0.0
    %37 = vmatprep.subr.mxu0 0.0
    %38 = vmatpush1.msra.mxu0 0.0
    %39 = vmatprep.subr.mxu0 0.0
    %40 = vmatpush1.msra.mxu0 0.0
    %41 = vmatprep.subr.mxu0 0.0
    %42 = vmatpush1.msra.mxu0 0.0
    %43 = vmatprep.subr.mxu0 0.0
    %44 = vmatpush1.msra.mxu0 0.0
    %45 = vmatprep.subr.mxu0 0.0
    %46 = vmatpush1.msra.mxu0 0.0
    %47 = vmatprep.subr.mxu0 0.0
    %48 = vmatpush1.msra.mxu0 0.0
    %49 = vmatprep.subr.mxu0 0.0
    %50 = vmatpush1.msra.mxu0 0.0
    %51 = vmatprep.subr.mxu0 0.0
    %52 = vmatpush1.msra.mxu0 0.0
    %53 = vmatprep.subr.mxu0 0.0
    %54 = vmatpush1.msra.mxu0 0.0
    %55 = vmatprep.subr.mxu0 0.0
    %56 = vmatpush1.msra.mxu0 0.0
    %57 = vmatprep.subr.mxu0 0.0
    %58 = vmatpush1.msra.mxu0 0.0
    %59 = vmatprep.subr.mxu0 0.0
    %60 = vmatpush1.msra.mxu0 0.0
    %61 = vmatprep.subr.mxu0 0.0
    %62 = vmatpush1.msra.mxu0 0.0
    %63 = vmatprep.subr.mxu0 0.0
    %64 = vmatpush1.msra.mxu0 0.0
    %65 = vmatprep.subr.mxu0 0.0
    %66 = vmatpush1.msra.mxu0 0.0
    %67 = vmatprep.subr.mxu0 0.0
    %68 = vmatpush1.msra.mxu0 0.0
    %69 = vmatprep.subr.mxu0 0.0
    %70 = vmatpush1.msra.mxu0 0.0
    %71 = vmatprep.subr.mxu0 0.0
    %72 = vmatpush1.msra.mxu0 0.0
    %73 = vmatprep.subr.mxu0 0.0
    %74 = vmatpush1.msra.mxu0 0.0
    %75 = vmatprep.subr.mxu0 0.0
    %76 = vmatpush1.msra.mxu0 0.0
    %77 = vmatprep.subr.mxu0 0.0
    %78 = vmatpush1.msra.mxu0 0.0
    %79 = vmatprep.subr.mxu0 0.0
    %80 = vmatpush1.msra.mxu0 0.0
    %81 = vmatprep.subr.mxu0 0.0
    %82 = vmatpush1.msra.mxu0 0.0
    %83 = vmatprep.mubr.f32.mxu0 0.0
    %84 = vmatmul.mubr.f32.gmra.mrb[0].mxu0 %v17
    %v85 = vpop.f32.mrb[0].mxu0
    %v86 = vadd.f32 %v13, %v85
    %v87 = vpop.f32.mrb[0].mxu0
    %88 = vdwg.mxu0
    %vm89 = vcmask 57344
    %90 = vst.msk [vmem:[#allocation2] sm:$0x1] %vm89, %v86
    // Predicated region
    $region10: #{model_forward.1} parent=1 // pred_check
      _
    $region11: #{model_forward.1} parent=1 // pred_check_branch
      %92 = sbr.rel (0) target = $region13
    $region12: #{model_forward.1} parent=1 // pred_region
      %s94 = ssub.s32 16, 16
      %95 = vsyncadd [#allocation3], %s94
      %s97 = sshll.u32 [#allocation2], 4
      %s98 = int_to_ptr.vmem [resolvable:$true] %s97
      %100 = dma.vmem_to_hbm [thread:$0]  %s98, 16, %s2, [#allocation3]
    $region13: #{model_forward.1} parent=1 // pred_fallthru
      _
    // Predicated region
    $region14: #{model_forward.1} parent=1 // pred_check
      _
    $region15: #{model_forward.1} parent=1 // pred_check_branch
      %102 = sbr.rel (0) target = $region17
    $region16: #{model_forward.1} parent=1 // pred_region
      %103 = dma.done [#allocation3], 16
    $region17: #{model_forward.1} parent=1 // pred_fallthru
      _
    %104 = vsyncpa [#allocation3], 1

</llo_original>
